<compile_context>
chip_gen: v5e
topology: v5e:2x2
jax: 0.10.0
libtpu: 0.0.40
codegen_flags: <defaults>
</compile_context>

<pallas_src>
import functools

import numpy as np
import jax
import jax.numpy as jnp
from jax import lax
from jax.experimental import pallas as pl
from jax.experimental.pallas import tpu as pltpu


def _round_up(x, m):
    return ((x + m - 1) // m) * m


def _window_classifier_kernel(x_ref, xh_ref, wf_ref, b_ref, o_ref, y_ref, *,
                              tile, halo, window_size, n_classes):
    """x_ref : (tile, D)       padded-activation rows [i*tile, (i+1)*tile)
       xh_ref: (halo, D)       padded-activation rows [(i+1)*tile, (i+1)*tile + halo)
       wf_ref: (D, NF)         fused taps Wf[d, k*NC + c] = w[k, d, c], zero-padded to NF
       b_ref : (1, NC)         f32 bias
       o_ref : (tile, NC)      output probabilities
       y_ref : (tile+halo, NF) f32 VMEM scratch"""
    # One lane-dense MXU pass over the tile (+ a tiny one for the halo rows).
    y_ref[0:tile, :] = jnp.dot(x_ref[...], wf_ref[...],
                               preferred_element_type=jnp.float32)
    y_ref[tile:tile + halo, :] = jnp.dot(xh_ref[...], wf_ref[...],
                                         preferred_element_type=jnp.float32)

    # Combine window taps: out[s, c] = sum_k Y[s + k, k*NC + c]
    # (shifted slices of the narrow 128-wide slab -- XLU/VPU only, no MXU re-passes).
    nc = n_classes
    acc = jnp.zeros((tile, nc), jnp.float32)
    for k in range(window_size):                       # static, unrolled
        acc = acc + y_ref[k:k + tile, k * nc:(k + 1) * nc]
    logits = acc + b_ref[...]

    if nc <= 2:                                        # module guarantees nc == 1 here
        o_ref[...] = jax.nn.sigmoid(logits)
    else:
        m = jnp.max(logits, axis=1, keepdims=True)
        e = jnp.exp(logits - m)
        s = jnp.sum(e, axis=1, keepdims=True)
        r = pl.reciprocal(s, approx=True)              # EUP slot
        r = r * (2.0 - s * r)                          # one Newton step -> full f32 accuracy
        o_ref[...] = e * r


def window_classifier_forward(seq_rep, conv_weight, conv_bias, window_size=9, *,
                              tile_s=512, compute_dtype=None):
    """seq_rep:     (seq_len, embed_dim)
       conv_weight: (n_classes_eff, 1, window_size, embed_dim)   PyTorch Conv2d OIHW layout
       conv_bias:   (n_classes_eff,)
       returns:     (seq_len, n_classes_eff) probabilities (f32), == torch forward output."""
    if window_size % 2 != 1:
        # Even windows change the torch output length (seq_len + 1); module default (9) is odd.
        raise NotImplementedError("window_classifier_forward requires an odd window_size")

    seq_len, embed_dim = seq_rep.shape
    n_classes = conv_weight.shape[0]
    pad = window_size // 2

    dtype = jnp.dtype(compute_dtype) if compute_dtype is not None else seq_rep.dtype
    itemsize = jnp.dtype(dtype).itemsize

    halo = max(16, _round_up(window_size - 1, 16))       # bf16-friendly sublane multiple
    nf = _round_up(window_size * n_classes, 128)         # lane-dense fused-weight width

    # Tile selection: multiple of `halo`, clamped so double-buffered blocks + f32 Y scratch
    # stay well inside the smallest scoped-VMEM budget (v5e 16 MiB default, v7x 64 MiB phys).
    tile = max(halo, min(_round_up(tile_s, halo), _round_up(seq_len, halo)))

    def _vmem_bytes(t):
        return (2 * (t + halo) * embed_dim * itemsize     # double-buffered x tile + halo
                + 2 * embed_dim * nf * itemsize           # fused weights
                + (t + halo) * nf * 4                     # Y scratch (f32)
                + 2 * t * n_classes * 4)                  # double-buffered output

    budget = 12 * 1024 * 1024
    while tile > halo and _vmem_bytes(tile) > budget:
        tile = max(halo, _round_up(tile // 2, halo))

    seq_pad = _round_up(seq_len, tile)
    n_tiles = seq_pad // tile
    ratio = tile // halo                                  # halo-block index stride

    # Padded activation: `pad` zero halo rows in front, the sequence, then zeros up to
    # seq_pad + halo (right conv halo + seq round-up + last-tile halo block).
    # TODO(synk): the zero halo could be built in-kernel (masked edge taps) to avoid this
    # extra HBM round-trip of the activation.
    x = seq_rep.astype(dtype)
    xp = jnp.zeros((seq_pad + halo, embed_dim), dtype).at[pad:pad + seq_len, :].set(x)

    # Fused weights: Wf[d, k*NC + c] = conv_weight[c, 0, k, d], zero-padded to nf lanes.
    wf = jnp.transpose(conv_weight[:, 0, :, :], (2, 1, 0))          # (D, WS, NC)
    wf = wf.reshape(embed_dim, window_size * n_classes).astype(dtype)
    wf = jnp.pad(wf, ((0, 0), (0, nf - window_size * n_classes)))
    b = conv_bias.astype(jnp.float32).reshape(1, n_classes)

    kernel = functools.partial(_window_classifier_kernel,
                               tile=tile, halo=halo,
                               window_size=window_size, n_classes=n_classes)

    out_full = pl.pallas_call(
        kernel,
        out_shape=jax.ShapeDtypeStruct((seq_pad, n_classes), jnp.float32),
        grid=(n_tiles,),
        in_specs=[
            pl.BlockSpec((tile, embed_dim), lambda i: (i, 0)),               # main tile
            pl.BlockSpec((halo, embed_dim), lambda i: ((i + 1) * ratio, 0)), # halo rows
            pl.BlockSpec((embed_dim, nf), lambda i: (0, 0)),                 # fused weights
            pl.BlockSpec((1, n_classes), lambda i: (0, 0)),                  # bias
        ],
        out_specs=pl.BlockSpec((tile, n_classes), lambda i: (i, 0)),
        scratch_shapes=[pltpu.VMEM((tile + halo, nf), jnp.float32)],
        compiler_params=pltpu.CompilerParams(
            dimension_semantics=("parallel",),            # seq tiles are independent (megacore)
            vmem_limit_bytes=32 * 1024 * 1024),
    )(xp, xp, wf, b)

    return out_full[:seq_len]


def _torch_reference(seq_rep, conv_w, conv_b, window_size):
    """Pure-XLA reference with the exact Conv2d (cross-correlation) semantics."""
    n_classes = conv_w.shape[0]
    pad = window_size // 2
    logits = lax.conv_general_dilated(
        seq_rep[None, None].astype(jnp.float32), conv_w.astype(jnp.float32), (1, 1),
        padding=((pad, pad), (0, 0)),
        dimension_numbers=("NCHW", "OIHW", "NCHW"))[0, :, :, 0].T + conv_b[None, :]
    if n_classes <= 2:
        return jax.nn.sigmoid(logits)
    return jax.nn.softmax(logits, axis=1)


if __name__ == "__main__":
    embed_dim, seq_len, window_size = 32, 40, 9

    key = jax.random.PRNGKey(0)
    k_x, k_w, k_b, k_w1, k_b1 = jax.random.split(key, 5)

    seq_rep = jax.random.normal(k_x, (seq_len, embed_dim), jnp.float32)

    fan_in = 1 * window_size * embed_dim                 # PyTorch Conv2d default init bound
    bound = 1.0 / np.sqrt(fan_in)

    # ---- softmax path: n_classes = 3 (module keeps 3) ----
    n_classes = 3
    conv_w = jax.random.uniform(k_w, (n_classes, 1, window_size, embed_dim),
                                jnp.float32, -bound, bound)
    conv_b = jax.random.uniform(k_b, (n_classes,), jnp.float32, -bound, bound)

    out = window_classifier_forward(seq_rep, conv_w, conv_b, window_size, tile_s=16)
    out = jax.block_until_ready(out)
    ref = _torch_reference(seq_rep, conv_w, conv_b, window_size)
    assert out.shape == (seq_len, n_classes)
    assert np.allclose(np.asarray(out), np.asarray(ref), atol=1e-4, rtol=1e-4)

    # ---- sigmoid path: original n_classes <= 2 -> effective 1 output channel ----
    conv_w1 = jax.random.uniform(k_w1, (1, 1, window_size, embed_dim),
                                 jnp.float32, -bound, bound)
    conv_b1 = jax.random.uniform(k_b1, (1,), jnp.float32, -bound, bound)
    out1 = window_classifier_forward(seq_rep, conv_w1, conv_b1, window_size, tile_s=16)
    out1 = jax.block_until_ready(out1)
    ref1 = _torch_reference(seq_rep, conv_w1, conv_b1, window_size)
    assert out1.shape == (seq_len, 1)
    assert np.allclose(np.asarray(out1), np.asarray(ref1), atol=1e-4, rtol=1e-4)

    # ---- bf16 activations/weights (MXU-native), f32 accumulation ----
    out_bf16 = window_classifier_forward(seq_rep, conv_w, conv_b, window_size,
                                         tile_s=16, compute_dtype=jnp.bfloat16)
    out_bf16 = jax.block_until_ready(out_bf16)
    assert np.allclose(np.asarray(out_bf16), np.asarray(ref), atol=5e-2, rtol=5e-2)

    print("KERNEL_OK")
</pallas_src>

<mosaic_0001>
module attributes {stable_mosaic.version = 11 : i64} {
  func.func @_window_classifier_kernel(%arg0: i32, %arg1: memref<16x32xf32, #tpu.memory_space<vmem>>, %arg2: memref<16x32xf32, #tpu.memory_space<vmem>>, %arg3: memref<32x128xf32, #tpu.memory_space<vmem>>, %arg4: memref<1x3xf32, #tpu.memory_space<vmem>>, %arg5: memref<16x3xf32, #tpu.memory_space<vmem>>, %arg6: memref<32x128xf32, #tpu.memory_space<vmem>>) attributes {dimension_semantics = [#tpu.dimension_semantics<parallel>], iteration_bounds = array<i64: 3>, scalar_prefetch = 0 : i64, scratch_operands = 1 : i64, tpu.core_type = #tpu.core_type<tc>, window_params = [{transform_indices = @transform_0, window_bounds = array<i64: 16, 32>}, {transform_indices = @transform_1, window_bounds = array<i64: 16, 32>}, {pipeline_mode = #tpu.pipeline_mode<synchronous>, transform_indices = @transform_2, window_bounds = array<i64: 32, 128>}, {pipeline_mode = #tpu.pipeline_mode<synchronous>, transform_indices = @transform_3, window_bounds = array<i64: 1, 3>}, {transform_indices = @transform_4, window_bounds = array<i64: 16, 3>}]} {
    %c0 = arith.constant 0 : index
    %c0_0 = arith.constant 0 : index
    %0 = vector.load %arg1[%c0, %c0_0] : memref<16x32xf32, #tpu.memory_space<vmem>>, vector<16x32xf32>
    %c0_1 = arith.constant 0 : index
    %c0_2 = arith.constant 0 : index
    %1 = vector.load %arg3[%c0_1, %c0_2] : memref<32x128xf32, #tpu.memory_space<vmem>>, vector<32x128xf32>
    %cst = arith.constant dense<0.000000e+00> : vector<16x128xf32>
    %2 = tpu.matmul %0, %1, %cst {dimension_numbers = #tpu.dot_dimension_numbers<[1], [0], [0], [1], [0, 0, 1, 1], [], []>} : vector<16x32xf32>, vector<32x128xf32>, vector<16x128xf32> -> vector<16x128xf32>
    %c0_3 = arith.constant 0 : index
    %c0_4 = arith.constant 0 : index
    %3 = vector.load %arg6[%c0_3, %c0_4] : memref<32x128xf32, #tpu.memory_space<vmem>>, vector<16x128xf32>
    tpu.vector_store %arg6[%c0_3, %c0_4], %2 {strides = array<i32>} : memref<32x128xf32, #tpu.memory_space<vmem>>, vector<16x128xf32>,
    %c0_5 = arith.constant 0 : index
    %c0_6 = arith.constant 0 : index
    %4 = vector.load %arg2[%c0_5, %c0_6] : memref<16x32xf32, #tpu.memory_space<vmem>>, vector<16x32xf32>
    %c0_7 = arith.constant 0 : index
    %c0_8 = arith.constant 0 : index
    %5 = vector.load %arg3[%c0_7, %c0_8] : memref<32x128xf32, #tpu.memory_space<vmem>>, vector<32x128xf32>
    %cst_9 = arith.constant dense<0.000000e+00> : vector<16x128xf32>
    %6 = tpu.matmul %4, %5, %cst_9 {dimension_numbers = #tpu.dot_dimension_numbers<[1], [0], [0], [1], [0, 0, 1, 1], [], []>} : vector<16x32xf32>, vector<32x128xf32>, vector<16x128xf32> -> vector<16x128xf32>
    %c16 = arith.constant 16 : index
    %c0_10 = arith.constant 0 : index
    %7 = vector.load %arg6[%c16, %c0_10] : memref<32x128xf32, #tpu.memory_space<vmem>>, vector<16x128xf32>
    tpu.vector_store %arg6[%c16, %c0_10], %6 {strides = array<i32>} : memref<32x128xf32, #tpu.memory_space<vmem>>, vector<16x128xf32>,
    %cst_11 = arith.constant 0.000000e+00 : f32
    %8 = vector.broadcast %cst_11 : f32 to vector<16x3xf32>
    %c0_12 = arith.constant 0 : index
    %c0_13 = arith.constant 0 : index
    %9 = vector.load %arg6[%c0_12, %c0_13] : memref<32x128xf32, #tpu.memory_space<vmem>>, vector<16x3xf32>
    %10 = arith.addf %8, %9 : vector<16x3xf32>
    %c1 = arith.constant 1 : index
    %c3 = arith.constant 3 : index
    %11 = vector.load %arg6[%c1, %c3] : memref<32x128xf32, #tpu.memory_space<vmem>>, vector<16x3xf32>
    %12 = arith.addf %10, %11 : vector<16x3xf32>
    %c2 = arith.constant 2 : index
    %c6 = arith.constant 6 : index
    %13 = vector.load %arg6[%c2, %c6] : memref<32x128xf32, #tpu.memory_space<vmem>>, vector<16x3xf32>
    %14 = arith.addf %12, %13 : vector<16x3xf32>
    %c3_14 = arith.constant 3 : index
    %c9 = arith.constant 9 : index
    %15 = vector.load %arg6[%c3_14, %c9] : memref<32x128xf32, #tpu.memory_space<vmem>>, vector<16x3xf32>
    %16 = arith.addf %14, %15 : vector<16x3xf32>
    %c4 = arith.constant 4 : index
    %c12 = arith.constant 12 : index
    %17 = vector.load %arg6[%c4, %c12] : memref<32x128xf32, #tpu.memory_space<vmem>>, vector<16x3xf32>
    %18 = arith.addf %16, %17 : vector<16x3xf32>
    %c5 = arith.constant 5 : index
    %c15 = arith.constant 15 : index
    %19 = vector.load %arg6[%c5, %c15] : memref<32x128xf32, #tpu.memory_space<vmem>>, vector<16x3xf32>
    %20 = arith.addf %18, %19 : vector<16x3xf32>
    %c6_15 = arith.constant 6 : index
    %c18 = arith.constant 18 : index
    %21 = vector.load %arg6[%c6_15, %c18] : memref<32x128xf32, #tpu.memory_space<vmem>>, vector<16x3xf32>
    %22 = arith.addf %20, %21 : vector<16x3xf32>
    %c7 = arith.constant 7 : index
    %c21 = arith.constant 21 : index
    %23 = vector.load %arg6[%c7, %c21] : memref<32x128xf32, #tpu.memory_space<vmem>>, vector<16x3xf32>
    %24 = arith.addf %22, %23 : vector<16x3xf32>
    %c8 = arith.constant 8 : index
    %c24 = arith.constant 24 : index
    %25 = vector.load %arg6[%c8, %c24] : memref<32x128xf32, #tpu.memory_space<vmem>>, vector<16x3xf32>
    %26 = arith.addf %24, %25 : vector<16x3xf32>
    %c0_16 = arith.constant 0 : index
    %c0_17 = arith.constant 0 : index
    %27 = vector.load %arg4[%c0_16, %c0_17] : memref<1x3xf32, #tpu.memory_space<vmem>>, vector<1x3xf32>
    %28 = vector.broadcast %27 : vector<1x3xf32> to vector<16x3xf32>
    %29 = arith.addf %26, %28 : vector<16x3xf32>
    %cst_18 = arith.constant dense<0xFF800000> : vector<16xf32>
    %30 = vector.multi_reduction <maximumf>, %29, %cst_18 [1] : vector<16x3xf32> to vector<16xf32>
    %31 = vector.shape_cast %30 : vector<16xf32> to vector<16x1xf32>
    %32 = vector.broadcast %31 : vector<16x1xf32> to vector<16x3xf32>
    %33 = arith.subf %29, %32 : vector<16x3xf32>
    %34 = math.exp %33 : vector<16x3xf32>
    %cst_19 = arith.constant dense<0.000000e+00> : vector<16xf32>
    %35 = vector.multi_reduction <add>, %34, %cst_19 [1] : vector<16x3xf32> to vector<16xf32>
    %36 = vector.shape_cast %35 : vector<16xf32> to vector<16x1xf32>
    %37 = tpu.reciprocal %36 {approx = true} : vector<16x1xf32> -> vector<16x1xf32>
    %38 = arith.mulf %36, %37 : vector<16x1xf32>
    %cst_20 = arith.constant 2.000000e+00 : f32
    %39 = vector.broadcast %cst_20 : f32 to vector<16x1xf32>
    %40 = arith.subf %39, %38 : vector<16x1xf32>
    %41 = arith.mulf %37, %40 : vector<16x1xf32>
    %42 = vector.broadcast %41 : vector<16x1xf32> to vector<16x3xf32>
    %43 = arith.mulf %34, %42 : vector<16x3xf32>
    %c0_21 = arith.constant 0 : index
    %c0_22 = arith.constant 0 : index
    %44 = vector.load %arg5[%c0_21, %c0_22] : memref<16x3xf32, #tpu.memory_space<vmem>>, vector<16x3xf32>
    tpu.vector_store %arg5[%c0_21, %c0_22], %43 {strides = array<i32>} : memref<16x3xf32, #tpu.memory_space<vmem>>, vector<16x3xf32>,
    return
  }
  func.func @transform_0(%arg0: i32) -> (i32, i32) {
    %c0_i32 = arith.constant 0 : i32
    %c0_i32_0 = arith.constant 0 : i32
    return %arg0, %c0_i32 : i32, i32
  }
  func.func @transform_1(%arg0: i32) -> (i32, i32) {
    %c1_i32 = arith.constant 1 : i32
    %0 = arith.addi %arg0, %c1_i32 : i32
    %c1_i32_0 = arith.constant 1 : i32
    %1 = arith.muli %0, %c1_i32_0 : i32
    %c0_i32 = arith.constant 0 : i32
    %c0_i32_1 = arith.constant 0 : i32
    return %1, %c0_i32 : i32, i32
  }
  func.func @transform_2(%arg0: i32) -> (i32, i32) {
    %c0_i32 = arith.constant 0 : i32
    %c0_i32_0 = arith.constant 0 : i32
    %c0_i32_1 = arith.constant 0 : i32
    return %c0_i32, %c0_i32_0 : i32, i32
  }
  func.func @transform_3(%arg0: i32) -> (i32, i32) {
    %c0_i32 = arith.constant 0 : i32
    %c0_i32_0 = arith.constant 0 : i32
    %c0_i32_1 = arith.constant 0 : i32
    return %c0_i32, %c0_i32_0 : i32, i32
  }
  func.func @transform_4(%arg0: i32) -> (i32, i32) {
    %c0_i32 = arith.constant 0 : i32
    %c0_i32_0 = arith.constant 0 : i32
    return %arg0, %c0_i32 : i32, i32
  }
}

</mosaic_0001>

<llo_original>
// kernel: tpu_custom_call.1
$region0: #{tpu_custom_call.1}
  #allocation0 [shape = 'u32[]', space=smem, size = 0x4, offset = 0x4, fixed_abs, tag = 'smem constant byte address 0x4 - core index']
  #allocation1 [shape = 'u32[72,128]{1,0:T(1,128)}', space=vmem, size = 0x9000, scoped, tag = 'internal scratch']
  #allocation2 [shape = 'f32[32,128]{1,0:T(8,128)}', space=vmem, size = 0x4000, scoped, tag = 'scratch operand']
  %s0 = inlined_call_operand.vmem [shape: f32[64,32], index: 0, kind: input, shape index: {}]
  %s1 = inlined_call_operand.vmem [shape: f32[64,32], index: 1, kind: input, shape index: {}]
  %s2 = inlined_call_operand.vmem [shape: f32[32,128], index: 2, kind: input, shape index: {}]
  %s3 = inlined_call_operand.vmem [shape: f32[1,3], index: 3, kind: input, shape index: {}]
  %s4 = inlined_call_operand.vmem [shape: f32[48,3], index: 4, kind: output, shape index: {}]
  %s5 = sld [smem:[#allocation0]]
  $region49: #{tpu_custom_call.1} parent=0
    _
  %s7 = ssub.s32 1, %s5
  %s8 = scalar_select 0, %s7, %s5
  loop: start=0, step=1, limit=5
  $region2: #{tpu_custom_call.1} parent=0 // loop_pre_header
    _
  $region3: #{tpu_custom_call.1} parent=0 // loop_header
    %s10 = sphi 0, %s14
    %p11 = scmp.ge.s32.totalorder %s10, 5
    %s20 = sphi 0, %s22
    %s23 = sphi 0, %s20
    %s24 = sphi 0, %s23
    %s40 = sphi 0, %s24
    %s48 = sphi 0, %s50
    %s51 = sphi 0, %s48
    %s52 = sphi 0, %s51
    %s68 = sphi 0, %s52
    %s72 = sphi 0, %s72
    %s74 = sphi 0, %s72
    %s75 = sphi 0, %s74
    %s89 = sphi 0, %s75
    %s93 = sphi 0, %s93
    %s95 = sphi 0, %s93
    %s96 = sphi 0, %s95
    %s110 = sphi 0, %s96
    %s116 = sphi 0, %s118
    %s119 = sphi 0, %s116
    %s120 = sphi 0, %s119
    %s136 = sphi 0, %s120
  $region4: #{tpu_custom_call.1} parent=0 // loop_header_branch
    %13 = sbr.rel (%p11) target = $region8
  $region5: #{tpu_custom_call.1} parent=0 // loop_body
    %s15 = ssub.s32 %s10, 1
    %s16 = ssub.s32 %s10, 2
    %s17 = sadd.s32 %s10, 1
    %s18 = ssub.s32 %s10, %s17
    %p19 = scmp.eq.s32.totalorder %s18, 0
    %s21 = sadd.s32 %s20, 1
    %s22 = scalar_select %p19, %s20, %s21
    %p25 = pneg %p19
    %p26 = scmp.eq.s32.totalorder %s10, 2
    %p27 = por %p25, %p26
    %p28 = scmp.ne.s32.totalorder %s20, %s23
    %p29 = scmp.eq.s32.totalorder %s10, 0
    %p30 = por %p28, %p29
    %p31 = scmp.ne.s32.totalorder %s20, %s23
    %p32 = scmp.eq.s32.totalorder %s15, 2
    %p33 = por %p31, %p32
    %p34 = scmp.ne.s32.totalorder %s23, %s24
    %p35 = scmp.eq.s32.totalorder %s15, 0
    %p36 = por %p34, %p35
    %p37 = scmp.ne.s32.totalorder %s23, %s24
    %p38 = scmp.eq.s32.totalorder %s16, 2
    %p39 = por %p37, %p38
    %p41 = scmp.ne.s32.totalorder %s24, %s40
    %p42 = scmp.eq.s32.totalorder %s16, 0
    %p43 = por %p41, %p42
    %s44 = sadd.s32 %s10, 1
    %s45 = sadd.s32 %s17, 1
    %s46 = ssub.s32 %s44, %s45
    %p47 = scmp.eq.s32.totalorder %s46, 0
    %s49 = sadd.s32 %s48, 1
    %s50 = scalar_select %p47, %s48, %s49
    %p53 = pneg %p47
    %p54 = scmp.eq.s32.totalorder %s10, 2
    %p55 = por %p53, %p54
    %p56 = scmp.ne.s32.totalorder %s48, %s51
    %p57 = scmp.eq.s32.totalorder %s10, 0
    %p58 = por %p56, %p57
    %p59 = scmp.ne.s32.totalorder %s48, %s51
    %p60 = scmp.eq.s32.totalorder %s15, 2
    %p61 = por %p59, %p60
    %p62 = scmp.ne.s32.totalorder %s51, %s52
    %p63 = scmp.eq.s32.totalorder %s15, 0
    %p64 = por %p62, %p63
    %p65 = scmp.ne.s32.totalorder %s51, %s52
    %p66 = scmp.eq.s32.totalorder %s16, 2
    %p67 = por %p65, %p66
    %p69 = scmp.ne.s32.totalorder %s52, %s68
    %p70 = scmp.eq.s32.totalorder %s16, 0
    %p71 = por %p69, %p70
    %s73 = sadd.s32 %s72, 1
    %p76 = scmp.eq.s32.totalorder %s10, 2
    %p77 = scmp.ne.s32.totalorder %s72, %s74
    %p78 = scmp.eq.s32.totalorder %s10, 0
    %p79 = por %p77, %p78
    %p80 = scmp.ne.s32.totalorder %s72, %s74
    %p81 = scmp.eq.s32.totalorder %s15, 2
    %p82 = por %p80, %p81
    %p83 = scmp.ne.s32.totalorder %s74, %s75
    %p84 = scmp.eq.s32.totalorder %s15, 0
    %p85 = por %p83, %p84
    %p86 = scmp.ne.s32.totalorder %s74, %s75
    %p87 = scmp.eq.s32.totalorder %s16, 2
    %p88 = por %p86, %p87
    %p90 = scmp.ne.s32.totalorder %s75, %s89
    %p91 = scmp.eq.s32.totalorder %s16, 0
    %p92 = por %p90, %p91
    %s94 = sadd.s32 %s93, 1
    %p97 = scmp.eq.s32.totalorder %s10, 2
    %p98 = scmp.ne.s32.totalorder %s93, %s95
    %p99 = scmp.eq.s32.totalorder %s10, 0
    %p100 = por %p98, %p99
    %p101 = scmp.ne.s32.totalorder %s93, %s95
    %p102 = scmp.eq.s32.totalorder %s15, 2
    %p103 = por %p101, %p102
    %p104 = scmp.ne.s32.totalorder %s95, %s96
    %p105 = scmp.eq.s32.totalorder %s15, 0
    %p106 = por %p104, %p105
    %p107 = scmp.ne.s32.totalorder %s95, %s96
    %p108 = scmp.eq.s32.totalorder %s16, 2
    %p109 = por %p107, %p108
    %p111 = scmp.ne.s32.totalorder %s96, %s110
    %p112 = scmp.eq.s32.totalorder %s16, 0
    %p113 = por %p111, %p112
    %s114 = ssub.s32 %s10, %s17
    %p115 = scmp.eq.s32.totalorder %s114, 0
    %s117 = sadd.s32 %s116, 1
    %s118 = scalar_select %p115, %s116, %s117
    %p121 = pneg %p115
    %p122 = scmp.eq.s32.totalorder %s10, 2
    %p123 = por %p121, %p122
    %p124 = scmp.ne.s32.totalorder %s116, %s119
    %p125 = scmp.eq.s32.totalorder %s10, 0
    %p126 = por %p124, %p125
    %p127 = scmp.ne.s32.totalorder %s116, %s119
    %p128 = scmp.eq.s32.totalorder %s15, 2
    %p129 = por %p127, %p128
    %p130 = scmp.ne.s32.totalorder %s119, %s120
    %p131 = scmp.eq.s32.totalorder %s15, 0
    %p132 = por %p130, %p131
    %p133 = scmp.ne.s32.totalorder %s119, %s120
    %p134 = scmp.eq.s32.totalorder %s16, 2
    %p135 = por %p133, %p134
    %p137 = scmp.ne.s32.totalorder %s120, %s136
    %p138 = scmp.eq.s32.totalorder %s16, 0
    %p139 = por %p137, %p138
    %p140 = scmp.le.s32.totalorder 1, %s10
    %p141 = scmp.lt.s32.totalorder %s10, 4
    %p142 = pnand %p140, %p141
    %p143 = pneg %p142
    // Predicated region
    $region9: #{tpu_custom_call.1} parent=5 // pred_check
      _
    $region10: #{tpu_custom_call.1} parent=5 // pred_check_branch
      %145 = sbr.rel (%p142) target = $region12
    $region11: #{tpu_custom_call.1} parent=5 // pred_region
      %s146 = ssub.s32 %s10, 1
      // Predicated region
      $region13: #{tpu_custom_call.1} parent=11 // pred_check
        %p147 = pneg %p85
      $region14: #{tpu_custom_call.1} parent=11 // pred_check_branch
        %149 = sbr.rel (%p147) target = $region16
      $region15: #{tpu_custom_call.1} parent=11 // pred_region
        _
      $region16: #{tpu_custom_call.1} parent=11 // pred_fallthru
        _
      // Predicated region
      $region17: #{tpu_custom_call.1} parent=11 // pred_check
        %p150 = pneg %p106
      $region18: #{tpu_custom_call.1} parent=11 // pred_check_branch
        %152 = sbr.rel (%p150) target = $region20
      $region19: #{tpu_custom_call.1} parent=11 // pred_region
        _
      $region20: #{tpu_custom_call.1} parent=11 // pred_fallthru
        _
    $region12: #{tpu_custom_call.1} parent=5 // pred_fallthru
      _
    %p153 = scmp.lt.s32.totalorder %s10, 3
    // Predicated region
    $region21: #{tpu_custom_call.1} parent=5 // pred_check
      %p154 = pneg %p153
    $region22: #{tpu_custom_call.1} parent=5 // pred_check_branch
      %156 = sbr.rel (%p154) target = $region24
    $region23: #{tpu_custom_call.1} parent=5 // pred_region
      // Predicated region
      $region25: #{tpu_custom_call.1} parent=23 // pred_check
        %p157 = pneg %p30
      $region26: #{tpu_custom_call.1} parent=23 // pred_check_branch
        %159 = sbr.rel (%p157) target = $region28
      $region27: #{tpu_custom_call.1} parent=23 // pred_region
        %s160 = smul.u32 2, %s10
        %p161 = scmp.lt.s32.totalorder %s160, 7
        %s162 = scalar_select %p161, %s160, 7
        %s163 = smul.addr %s162, 8
        %s164 = scalar_lea.vmem %s0, %s163
        %s165 = smul.u32 2, %s10
      $region28: #{tpu_custom_call.1} parent=23 // pred_fallthru
        _
      // Predicated region
      $region29: #{tpu_custom_call.1} parent=23 // pred_check
        %p166 = pneg %p58
      $region30: #{tpu_custom_call.1} parent=23 // pred_check_branch
        %168 = sbr.rel (%p166) target = $region32
      $region31: #{tpu_custom_call.1} parent=23 // pred_region
        %s169 = sadd.s32 %s10, 1
        %s170 = smul.u32 2, %s169
        %p171 = scmp.lt.s32.totalorder %s170, 7
        %s172 = scalar_select %p171, %s170, 7
        %s173 = smul.addr %s172, 8
        %s174 = scalar_lea.vmem %s1, %s173
        %s175 = sadd.s32 %s10, 1
        %s176 = smul.u32 2, %s175
      $region32: #{tpu_custom_call.1} parent=23 // pred_fallthru
        _
    $region24: #{tpu_custom_call.1} parent=5 // pred_fallthru
      _
    %p177 = scmp.le.s32.totalorder 1, %s10
    %p178 = scmp.lt.s32.totalorder %s10, 4
    %p179 = pnand %p177, %p178
    %p180 = pneg %p179
    // Predicated region
    $region33: #{tpu_custom_call.1} parent=5 // pred_check
      _
    $region34: #{tpu_custom_call.1} parent=5 // pred_check_branch
      %182 = sbr.rel (%p179) target = $region36
    $region35: #{tpu_custom_call.1} parent=5 // pred_region
      %s183 = ssub.s32 %s10, 1
      %s184 = smul.u32 2, %s15
      %p185 = scmp.lt.s32.totalorder %s184, 7
      %s186 = scalar_select %p185, %s184, 7
      %s187 = smul.addr %s186, 8
      %s188 = scalar_lea.vmem %s0, %s187
      %p189 = pneg %p36
      %p190 = pneg %p33
      %s191 = sadd.s32 %s15, 1
      %s192 = smul.u32 2, %s191
      %p193 = scmp.lt.s32.totalorder %s192, 7
      %s194 = scalar_select %p193, %s192, 7
      %s195 = smul.addr %s194, 8
      %s196 = scalar_lea.vmem %s1, %s195
      %p197 = pneg %p64
      %p198 = pneg %p61
      %p199 = pneg %p85
      %p200 = pneg %p82
      %p201 = pneg %p106
      %p202 = pneg %p103
      %p203 = pneg %p132
      %p204 = pneg %p129
      %s205 = smul.u32 2, %s15
      %p206 = scmp.lt.s32.totalorder %s205, 5
      %s207 = scalar_select %p206, %s205, 5
      %s208 = smul.addr %s207, 8
      %s209 = scalar_lea.vmem %s4, %s208
      %s210 = smul.u32 2, %s15
      %p211 = scmp.lt.s32.totalorder %s210, 7
      %s212 = scalar_select %p211, %s210, 7
      %s213 = smul.addr %s212, 8
      %s214 = scalar_lea.vmem %s0, %s213
      %s215 = smul.u32 2, %s15
      %s216 = sadd.s32 %s15, 1
      %s217 = smul.u32 2, %s216
      %p218 = scmp.lt.s32.totalorder %s217, 7
      %s219 = scalar_select %p218, %s217, 7
      %s220 = smul.addr %s219, 8
      %s221 = scalar_lea.vmem %s1, %s220
      %s222 = sadd.s32 %s15, 1
      %s223 = smul.u32 2, %s222
      %s224 = smul.u32 2, %s15
      %p225 = scmp.lt.s32.totalorder %s224, 5
      %s226 = scalar_select %p225, %s224, 5
      %s227 = smul.addr %s226, 8
      %s228 = scalar_lea.vmem %s4, %s227
      %s229 = smul.u32 2, %s15
      %v230 = vld [vmem:[%s214] sm:$0xff]
      %v231 = vld [vmem:[%s214 + $0x8] sm:$0xff]
      %v232 = vld [vmem:[%s2] sm:$0xff]
      %v233 = vld [vmem:[%s2 + $0x8] sm:$0xff]
      %v234 = vld [vmem:[%s2 + $0x10] sm:$0xff]
      %v235 = vld [vmem:[%s2 + $0x18] sm:$0xff]
      %vm236 = vcmask 261120
      %v238 = vsel %vm236, %v230, 0
      %v241 = vsel %vm236, %v231, 0
      %243 = vmatpush.msra.mxu0 0.0
      %244 = vmatpush.msra.mxu0 0.0
      %245 = vmatpush.msra.mxu0 0.0
      %246 = vmatpush.msra.mxu0 0.0
      %247 = vmatpush.msra.mxu0 0.0
      %248 = vmatpush.msra.mxu0 0.0
      %249 = vmatpush.msra.mxu0 0.0
      %250 = vmatpush.msra.mxu0 0.0
      %251 = vmatpush.msra.mxu0 0.0
      %252 = vmatpush.msra.mxu0 0.0
      %253 = vmatpush.msra.mxu0 0.0
      %254 = vmatpush.msra.mxu0 0.0
      %255 = vmatpush.msra.mxu0 %v235
      %256 = vmatpush.msra.mxu0 %v234
      %257 = vmatpush.msra.mxu0 %v233
      %258 = vmatpush.msra.mxu0 %v232
      %259 = vmatmul.f32.gmra.mxu0 %v238
      %v260 = vpop.f32.mrf.mxu0
      %v261 = vadd.f32 0.0, %v260
      %262 = vmatmul.f32.gmra.mxu0 %v241
      %v263 = vpop.f32.mrf.mxu0
      %v264 = vadd.f32 0.0, %v263
      %265 = vdwg.mxu0
      %266 = vst [vmem:[#allocation2] sm:$0xff] %v261
      %267 = vst [vmem:[#allocation2 + $0x8] sm:$0xff] %v264
      %v268 = vld [vmem:[%s221] sm:$0xff]
      %v269 = vld [vmem:[%s221 + $0x8] sm:$0xff]
      %v270 = vld [vmem:[%s2] sm:$0xff]
      %v271 = vld [vmem:[%s2 + $0x8] sm:$0xff]
      %v272 = vld [vmem:[%s2 + $0x10] sm:$0xff]
      %v273 = vld [vmem:[%s2 + $0x18] sm:$0xff]
      %v275 = vsel %vm236, %v268, 0
      %v278 = vsel %vm236, %v269, 0
      %280 = vmatpush.msra.mxu0 0.0
      %281 = vmatpush.msra.mxu0 0.0
      %282 = vmatpush.msra.mxu0 0.0
      %283 = vmatpush.msra.mxu0 0.0
      %284 = vmatpush.msra.mxu0 0.0
      %285 = vmatpush.msra.mxu0 0.0
      %286 = vmatpush.msra.mxu0 0.0
      %287 = vmatpush.msra.mxu0 0.0
      %288 = vmatpush.msra.mxu0 0.0
      %289 = vmatpush.msra.mxu0 0.0
      %290 = vmatpush.msra.mxu0 0.0
      %291 = vmatpush.msra.mxu0 0.0
      %292 = vmatpush.msra.mxu0 %v273
      %293 = vmatpush.msra.mxu0 %v272
      %294 = vmatpush.msra.mxu0 %v271
      %295 = vmatpush.msra.mxu0 %v270
      %296 = vmatmul.f32.gmra.mxu0 %v275
      %v297 = vpop.f32.mrf.mxu0
      %v298 = vadd.f32 0.0, %v297
      %299 = vmatmul.f32.gmra.mxu0 %v278
      %v300 = vpop.f32.mrf.mxu0
      %v301 = vadd.f32 0.0, %v300
      %302 = vdwg.mxu0
      %303 = vst [vmem:[#allocation2 + $0x10] sm:$0xff] %v298
      %304 = vst [vmem:[#allocation2 + $0x18] sm:$0xff] %v301
      %v305 = vld [vmem:[#allocation2] sm:$0xff]
      %v306 = vld [vmem:[#allocation2 + $0x8] sm:$0xff]
      %v307 = vadd.f32 %v305, 0.0
      %v308 = vadd.f32 %v306, 0.0
      %v309 = vld [vmem:[#allocation2 + $0x1] sm:$0xff]
      %v310 = vld [vmem:[#allocation2 + $0x9] sm:$0xff]
      %313 = vrot.lane.b32.xlu0 %v309, 125
      %v314 = vpop.permute.xlu0 %313
      %315 = vrot.lane.b32.xlu0 %v310, 125
      %v316 = vpop.permute.xlu0 %315
      %v319 = vadd.f32 %v307, %v314
      %v320 = vadd.f32 %v308, %v316
      %v321 = vld [vmem:[#allocation2 + $0x2] sm:$0xff]
      %v322 = vld [vmem:[#allocation2 + $0xa] sm:$0xff]
      %325 = vrot.lane.b32.xlu0 %v321, 122
      %v326 = vpop.permute.xlu0 %325
      %327 = vrot.lane.b32.xlu0 %v322, 122
      %v328 = vpop.permute.xlu0 %327
      %v331 = vadd.f32 %v319, %v326
      %v332 = vadd.f32 %v320, %v328
      %v333 = vld [vmem:[#allocation2 + $0x3] sm:$0xff]
      %v334 = vld [vmem:[#allocation2 + $0xb] sm:$0xff]
      %337 = vrot.lane.b32.xlu0 %v333, 119
      %v338 = vpop.permute.xlu0 %337
      %339 = vrot.lane.b32.xlu0 %v334, 119
      %v340 = vpop.permute.xlu0 %339
      %v343 = vadd.f32 %v331, %v338
      %v344 = vadd.f32 %v332, %v340
      %v345 = vld [vmem:[#allocation2 + $0x4] sm:$0xff]
      %v346 = vld [vmem:[#allocation2 + $0xc] sm:$0xff]
      %349 = vrot.lane.b32.xlu0 %v345, 116
      %v350 = vpop.permute.xlu0 %349
      %351 = vrot.lane.b32.xlu0 %v346, 116
      %v352 = vpop.permute.xlu0 %351
      %v355 = vadd.f32 %v343, %v350
      %v356 = vadd.f32 %v344, %v352
      %v357 = vld [vmem:[#allocation2 + $0x5] sm:$0xff]
      %v358 = vld [vmem:[#allocation2 + $0xd] sm:$0xff]
      %361 = vrot.lane.b32.xlu0 %v357, 113
      %v362 = vpop.permute.xlu0 %361
      %363 = vrot.lane.b32.xlu0 %v358, 113
      %v364 = vpop.permute.xlu0 %363
      %v367 = vadd.f32 %v355, %v362
      %v368 = vadd.f32 %v356, %v364
      %v369 = vld [vmem:[#allocation2 + $0x6] sm:$0xff]
      %v370 = vld [vmem:[#allocation2 + $0xe] sm:$0xff]
      %373 = vrot.lane.b32.xlu0 %v369, 110
      %v374 = vpop.permute.xlu0 %373
      %375 = vrot.lane.b32.xlu0 %v370, 110
      %v376 = vpop.permute.xlu0 %375
      %v379 = vadd.f32 %v367, %v374
      %v380 = vadd.f32 %v368, %v376
      %v381 = vld [vmem:[#allocation2 + $0x7] sm:$0xff]
      %v382 = vld [vmem:[#allocation2 + $0xf] sm:$0xff]
      %385 = vrot.lane.b32.xlu0 %v381, 107
      %v386 = vpop.permute.xlu0 %385
      %387 = vrot.lane.b32.xlu0 %v382, 107
      %v388 = vpop.permute.xlu0 %387
      %v391 = vadd.f32 %v379, %v386
      %v392 = vadd.f32 %v380, %v388
      %v393 = vld [vmem:[#allocation2 + $0x10] sm:$0xff]
      %396 = vrot.lane.b32.xlu0 %v306, 104
      %v397 = vpop.permute.xlu0 %396
      %398 = vrot.lane.b32.xlu0 %v393, 104
      %v399 = vpop.permute.xlu0 %398
      %v402 = vadd.f32 %v391, %v397
      %v403 = vadd.f32 %v392, %v399
      %v404 = vld [vmem:[%s3] sm:$0x1]
      %v406 = vperm.slane %v404, 0
      %v408 = vadd.f32 %v402, %v406
      %v409 = vadd.f32 %v403, %v406
      %vm410 = vcmask 23552
      %v411 = vsel %vm410, %v408, -inf
      %412 = vmax.xlane.f32.xlu0 %v411
      %v413 = vpop.xlane.xlu0 %412
      %v414 = vsel %vm410, %v409, -inf
      %415 = vmax.xlane.f32.xlu0 %v414
      %v416 = vpop.xlane.xlu0 %415
      %v417 = vsub.f32 %v408, %v413
      %v418 = vsub.f32 %v409, %v416
      %v419 = vmul.f32 %v417, 1.442695
      %v420 = vpow.pop %v419
      %v421 = vmul.f32 %v418, 1.442695
      %v422 = vpow.pop %v421
      %v423 = vsel %vm410, %v420, 0.0
      %424 = vadd.xlane.f32.xlu0 %v423
      %v425 = vpop.xlane.xlu0 %424
      %v426 = vsel %vm410, %v422, 0.0
      %427 = vadd.xlane.f32.xlu0 %v426
      %v428 = vpop.xlane.xlu0 %427
      %v429 = vrcp.pop %v425
      %v430 = vrcp.pop %v428
      %v431 = vmul.f32 %v425, %v429
      %v432 = vmul.f32 %v428, %v430
      %v433 = vsub.f32 2.0, %v431
      %v434 = vsub.f32 2.0, %v432
      %v435 = vmul.f32 %v429, %v433
      %v436 = vmul.f32 %v430, %v434
      %v437 = vmul.f32 %v420, %v435
      %v438 = vmul.f32 %v422, %v436
      %439 = vst.msk [vmem:[%s228] sm:$0xff] %vm410, %v437
      %440 = vst.msk [vmem:[%s228 + $0x8] sm:$0xff] %vm410, %v438
      %s441 = smul.u32 2, %s15
      %p442 = scmp.lt.s32.totalorder %s441, 5
      %s443 = scalar_select %p442, %s441, 5
      %s444 = smul.addr %s443, 8
      %s445 = scalar_lea.vmem %s4, %s444
      // Predicated region
      $region37: #{tpu_custom_call.1} parent=35 // pred_check
        %p446 = pneg %p129
      $region38: #{tpu_custom_call.1} parent=35 // pred_check_branch
        %448 = sbr.rel (%p446) target = $region40
      $region39: #{tpu_custom_call.1} parent=35 // pred_region
        %s449 = smul.u32 2, %s15
      $region40: #{tpu_custom_call.1} parent=35 // pred_fallthru
        _
    $region36: #{tpu_custom_call.1} parent=5 // pred_fallthru
      _
    %p450 = scmp.le.s32.totalorder 2, %s10
    // Predicated region
    $region41: #{tpu_custom_call.1} parent=5 // pred_check
      %p451 = pneg %p450
    $region42: #{tpu_custom_call.1} parent=5 // pred_check_branch
      %453 = sbr.rel (%p451) target = $region44
    $region43: #{tpu_custom_call.1} parent=5 // pred_region
      %s454 = ssub.s32 %s10, 2
      // Predicated region
      $region45: #{tpu_custom_call.1} parent=43 // pred_check
        %p455 = pneg %p135
      $region46: #{tpu_custom_call.1} parent=43 // pred_check_branch
        %457 = sbr.rel (%p455) target = $region48
      $region47: #{tpu_custom_call.1} parent=43 // pred_region
        %s458 = smul.u32 2, %s16
        %p459 = scmp.lt.s32.totalorder %s458, 5
        %s460 = scalar_select %p459, %s458, 5
        %s461 = smul.addr %s460, 8
        %s462 = scalar_lea.vmem %s4, %s461
      $region48: #{tpu_custom_call.1} parent=43 // pred_fallthru
        _
    $region44: #{tpu_custom_call.1} parent=5 // pred_fallthru
      _
  $region6: #{tpu_custom_call.1} parent=0 // loop_footer
    %s14 = sadd.s32 1, %s10
  $region7: #{tpu_custom_call.1} parent=0 // loop_footer_branch
    %9 = sbr.rel target = $region3
  $region8: #{tpu_custom_call.1} parent=0 // loop_exit
    _

</llo_original>
